<compile_context>
chip_gen: v6e
topology: v6e:2x2x1
jax: 0.10.0
libtpu: 0.0.40
codegen_flags: <defaults>
</compile_context>

<pallas_src>
import functools

import jax
import jax.numpy as jnp
from jax import lax
from jax.experimental import pallas as pl
from jax.experimental.pallas import tpu as pltpu

_EPS = 1e-12  # same eps as torch.nn.functional.normalize


def _round_up(x, n):
    return ((x + n - 1) // n) * n


def _vmem_capacity_bytes():
    try:
        return int(pltpu.get_tpu_info().vmem_capacity_bytes)
    except Exception:
        return 64 * 1024 * 1024  # conservative (v7x per-TC) fallback


def _est_vmem(tb, tn, din, f_item, w_item, o_item):
    """Rough VMEM footprint of the pipelined buffers for a (tb, tn) tile."""
    def tile_bytes(r, c, item):
        sub = 8 if item >= 4 else (16 if item == 2 else 32)
        return _round_up(r, sub) * _round_up(c, 128) * item

    feat = 2 * tile_bytes(tb, din, f_item)      # double-buffered feature tile
    wgt = 2 * tile_bytes(din, tn, w_item)       # double-buffered weight tile
    outb = 2 * tile_bytes(tb, tn, o_item)       # double-buffered output tile
    lab = 2 * tile_bytes(tb, 1, 4)              # labels
    rsc = 2 * tile_bytes(tb, 1, 4)              # row scale
    col = tile_bytes(1, tn, 4)                  # col-inv scratch
    return feat + wgt + outb + lab + rsc + col


# ---------------------------------------------------------------------------
# fused matmul + (optional col/row scales) + margin kernel
# ---------------------------------------------------------------------------
def _logit_margin_kernel(feat_ref, w_ref, labels_ref, rowscale_ref, out_ref,
                         colinv_ref, *, s, m, w_normalization):
    # MXU matmul in the operand dtype, fp32 accumulation.
    logits = jnp.dot(feat_ref[...], w_ref[...],
                     preferred_element_type=jnp.float32)              # (TB, TN) f32

    if w_normalization:
        # 1/max(||w_col||, eps), computed once per class tile from the resident
        # weight block (batch index 0); reused for every batch tile of this class
        # tile. Zero extra HBM traffic vs. a separate normalization pass.
        @pl.when(pl.program_id(1) == 0)
        def _():
            w32 = w_ref[...].astype(jnp.float32)
            sumsq = jnp.sum(w32 * w32, axis=0, keepdims=True)          # (1, TN)
            colinv_ref[...] = lax.rsqrt(
                jnp.maximum(sumsq, jnp.float32(_EPS * _EPS)))
        logits = logits * colinv_ref[...]

    if s is not None:
        # s * normalize(feats, dim=1) @ w == (feats @ w) * (s / max(||row||, eps))
        # row scale precomputed once in the wrapper -> not redone per class tile.
        logits = logits * rowscale_ref[...]                            # (TB, 1) f32

    # margin: add -m at (i, labels[i]). Negative labels (incl. the -1 sentinel for
    # labels=None / unknown samples) never match since col_ids >= 0.
    labels = labels_ref[...]                                           # (TB, 1) int32
    tb, tn = logits.shape
    col_ids = pl.program_id(0) * tn + lax.broadcasted_iota(jnp.int32, (tb, tn), 1)
    logits = jnp.where(col_ids == labels, logits - jnp.float32(m), logits)

    out_ref[...] = logits.astype(out_ref.dtype)


def logit_margin_forward(features, w, labels, *, s=None, m=0.3, w_normalization=False):
    """JAX wrapper mirroring LogitMargin.forward(features, labels)."""
    B, Din = features.shape
    Din_w, Dout = w.shape
    assert Din == Din_w
    out_dtype = features.dtype

    f_item = jnp.dtype(features.dtype).itemsize
    w_item = jnp.dtype(w.dtype).itemsize
    o_item = f_item

    # --- class-dim padding: lane-dense (multiple of 128) output / weight tiles ---
    Dp = _round_up(Dout, 128)
    row_mult = 8 if f_item >= 4 else (16 if f_item == 2 else 32)

    # --- VMEM-aware tile selection (per-generation: derived from actual capacity) ---
    cap = _vmem_capacity_bytes()
    vmem_limit = min(int(cap * 0.75), cap - (8 << 20))   # ~48 MiB on v7x, ~96 MiB on v5e/v6e
    budget = vmem_limit - (4 << 20)

    b_cap = _round_up(B, row_mult)
    tn_opts = [t for t in (1024, 512, 256, 128) if t <= Dp and Dp % t == 0] or [128]
    tb_opts = sorted({min(t, b_cap) for t in (512, 256, 128, 64, 32, 16, 8)
                      if t >= row_mult}, reverse=True) or [b_cap]

    TB, TN = tb_opts[-1], tn_opts[-1]
    found = False
    for tn in tn_opts:                       # prefer the widest lane-dense class tile
        for tb in tb_opts:                   # then the largest batch tile that fits
            if _est_vmem(tb, tn, Din, f_item, w_item, o_item) <= budget:
                TB, TN, found = tb, tn, True
                break
        if found:
            break
    # TODO(synk): for very large in_features that still exceed VMEM, add a Din (K)
    # reduction grid axis with an fp32 accumulator instead of shrinking tiles.

    Bp = _round_up(B, TB)

    feats_p = features if Bp == B else jnp.pad(features, ((0, Bp - B), (0, 0)))
    # NOTE: in a training loop the class-dim-padded weight should be cached by the
    # caller; padding here costs one extra read+write of W per call when Dout%128!=0.
    w_p = w if Dp == Dout else jnp.pad(w, ((0, 0), (0, Dp - Dout)))

    if labels is None:
        labels_arr = jnp.full((Bp, 1), -1, dtype=jnp.int32)            # sentinel -> no margin
    else:
        labels_arr = labels.astype(jnp.int32).reshape(B, 1)
        if Bp != B:
            labels_arr = jnp.pad(labels_arr, ((0, Bp - B), (0, 0)), constant_values=-1)

    if s is not None:
        f32 = features.astype(jnp.float32)
        sumsq = jnp.sum(f32 * f32, axis=1, keepdims=True)              # (B, 1)
        row_scale = jnp.float32(s) * lax.rsqrt(
            jnp.maximum(sumsq, jnp.float32(_EPS * _EPS)))
        if Bp != B:
            row_scale = jnp.pad(row_scale, ((0, Bp - B), (0, 0)))
    else:
        row_scale = jnp.zeros((Bp, 1), jnp.float32)                    # unused

    nj = Dp // TN
    nb = Bp // TB

    kernel = functools.partial(_logit_margin_kernel, s=s, m=m,
                               w_normalization=w_normalization)

    cost = pl.CostEstimate(
        flops=2 * Bp * Din * Dp,
        transcendentals=0,
        bytes_accessed=Din * Dp * w_item + nj * Bp * Din * f_item + Bp * Dp * o_item,
    )

    out = pl.pallas_call(
        kernel,
        out_shape=jax.ShapeDtypeStruct((Bp, Dp), out_dtype),
        grid=(nj, nb),  # class outer => weight block resident across batch tiles
        in_specs=[
            pl.BlockSpec((TB, Din), lambda j, i: (i, 0)),   # features: streamed per batch tile
            pl.BlockSpec((Din, TN), lambda j, i: (0, j)),   # weight:   resident per class tile
            pl.BlockSpec((TB, 1), lambda j, i: (i, 0)),     # labels (int32 column)
            pl.BlockSpec((TB, 1), lambda j, i: (i, 0)),     # precomputed row scale (f32)
        ],
        out_specs=pl.BlockSpec((TB, TN), lambda j, i: (i, j)),
        scratch_shapes=[pltpu.VMEM((1, TN), jnp.float32)],  # per-class-tile col 1/||w||
        compiler_params=pltpu.CompilerParams(
            # class axis parallel (shardable across TCs on v7x -> W streamed once per
            # core's slice); batch axis sequential so the colinv scratch trick holds.
            dimension_semantics=("parallel", "arbitrary"),
            vmem_limit_bytes=int(vmem_limit),
        ),
        cost_estimate=cost,
    )(feats_p, w_p, labels_arr, row_scale)

    return out[:B, :Dout]


# ---------------------------------------------------------------------------
# pure-JAX reference
# ---------------------------------------------------------------------------
def _reference(features, w, labels, *, s=None, m=0.3, w_normalization=False):
    w = w.astype(jnp.float32)
    feats = features.astype(jnp.float32)
    if w_normalization:
        w = w / jnp.maximum(jnp.linalg.norm(w, axis=0, keepdims=True), _EPS)
    if s is None:
        logits = feats @ w
    else:
        logits = s * (feats / jnp.maximum(
            jnp.linalg.norm(feats, axis=1, keepdims=True), _EPS)) @ w
    if labels is None:
        return logits
    margin = jnp.where(
        (labels[:, None] >= 0) & (jnp.arange(w.shape[1])[None, :] == labels[:, None]),
        -m, 0.0)
    return logits + margin


if __name__ == "__main__":
    B, in_features, out_features = 8, 32, 16
    key = jax.random.PRNGKey(0)
    k_feat, k_w, k_lab = jax.random.split(key, 3)

    features = jax.random.normal(k_feat, (B, in_features), dtype=jnp.float32)

    # deterministic xavier_normal_-style init: std = sqrt(2 / (fan_in + fan_out))
    std = (2.0 / (in_features + out_features)) ** 0.5
    w = std * jax.random.normal(k_w, (in_features, out_features), dtype=jnp.float32)

    # labels with some "unknown" (-1) entries, as in the open-set setting
    labels = jax.random.randint(k_lab, (B,), -1, out_features, dtype=jnp.int32)

    # 1) original SM-Softmax config: s=None, w_normalization=False, m=0.3
    out = logit_margin_forward(features, w, labels, s=None, m=0.3, w_normalization=False)
    jax.block_until_ready(out)
    ref = _reference(features, w, labels, s=None, m=0.3, w_normalization=False)
    assert jnp.allclose(out, ref, atol=1e-4, rtol=1e-4), "mismatch vs reference"

    # 2) normalized variant (s set, w_normalization=True)
    out2 = logit_margin_forward(features, w, labels, s=16.0, m=0.3, w_normalization=True)
    jax.block_until_ready(out2)
    ref2 = _reference(features, w, labels, s=16.0, m=0.3, w_normalization=True)
    assert jnp.allclose(out2, ref2, atol=1e-4, rtol=1e-4), "mismatch vs reference (normalized)"

    # 3) eval-time path (labels=None)
    out3 = logit_margin_forward(features, w, None, s=None, m=0.3)
    jax.block_until_ready(out3)
    assert jnp.allclose(out3, _reference(features, w, None), atol=1e-4, rtol=1e-4)

    # 4) bf16 operands on the MXU (fp32 accumulation), bf16 output
    out4 = logit_margin_forward(features.astype(jnp.bfloat16), w.astype(jnp.bfloat16),
                                labels, s=None, m=0.3, w_normalization=False)
    jax.block_until_ready(out4)
    assert out4.dtype == jnp.bfloat16
    assert jnp.allclose(out4.astype(jnp.float32), ref, atol=1e-1, rtol=1e-1), \
        "mismatch vs reference (bf16)"

    print("KERNEL_OK")
</pallas_src>

<mosaic_0001>
module attributes {stable_mosaic.version = 11 : i64} {
  func.func @_logit_margin_kernel(%arg0: i32, %arg1: i32, %arg2: memref<8x32xf32, #tpu.memory_space<vmem>>, %arg3: memref<32x128xf32, #tpu.memory_space<vmem>>, %arg4: memref<8x1xi32, #tpu.memory_space<vmem>>, %arg5: memref<8x1xf32, #tpu.memory_space<vmem>>, %arg6: memref<8x128xf32, #tpu.memory_space<vmem>>, %arg7: memref<1x128xf32, #tpu.memory_space<vmem>>) attributes {dimension_semantics = [#tpu.dimension_semantics<parallel>, #tpu.dimension_semantics<arbitrary>], iteration_bounds = array<i64: 1, 1>, scalar_prefetch = 0 : i64, scratch_operands = 1 : i64, tpu.core_type = #tpu.core_type<tc>, window_params = [{transform_indices = @transform_0, window_bounds = array<i64: 8, 32>}, {transform_indices = @transform_1, window_bounds = array<i64: 32, 128>}, {transform_indices = @transform_2, window_bounds = array<i64: 8, 1>}, {transform_indices = @transform_3, window_bounds = array<i64: 8, 1>}, {transform_indices = @transform_4, window_bounds = array<i64: 8, 128>}]} {
    %c0 = arith.constant 0 : index
    %c0_0 = arith.constant 0 : index
    %0 = vector.load %arg2[%c0, %c0_0] : memref<8x32xf32, #tpu.memory_space<vmem>>, vector<8x32xf32>
    %c0_1 = arith.constant 0 : index
    %c0_2 = arith.constant 0 : index
    %1 = vector.load %arg3[%c0_1, %c0_2] : memref<32x128xf32, #tpu.memory_space<vmem>>, vector<32x128xf32>
    %cst = arith.constant dense<0.000000e+00> : vector<8x128xf32>
    %2 = tpu.matmul %0, %1, %cst {dimension_numbers = #tpu.dot_dimension_numbers<[1], [0], [0], [1], [0, 0, 1, 1], [], []>} : vector<8x32xf32>, vector<32x128xf32>, vector<8x128xf32> -> vector<8x128xf32>
    %c0_3 = arith.constant 0 : index
    %c0_4 = arith.constant 0 : index
    %3 = vector.load %arg4[%c0_3, %c0_4] : memref<8x1xi32, #tpu.memory_space<vmem>>, vector<8x1xi32>
    %c128_i32 = arith.constant 128 : i32
    %4 = arith.muli %arg0, %c128_i32 : i32
    %5 = tpu.iota {dimensions = array<i32: 1>} : vector<8x128xi32>
    %6 = vector.broadcast %4 : i32 to vector<8x128xi32>
    %7 = arith.addi %6, %5 : vector<8x128xi32>
    %8 = vector.broadcast %3 : vector<8x1xi32> to vector<8x128xi32>
    %9 = arith.cmpi eq, %7, %8 : vector<8x128xi32>
    %cst_5 = arith.constant 3.000000e-01 : f32
    %10 = vector.broadcast %cst_5 : f32 to vector<8x128xf32>
    %11 = arith.subf %2, %10 : vector<8x128xf32>
    %12 = arith.select %9, %11, %2 : vector<8x128xi1>, vector<8x128xf32>
    %c0_6 = arith.constant 0 : index
    %c0_7 = arith.constant 0 : index
    %13 = vector.load %arg6[%c0_6, %c0_7] : memref<8x128xf32, #tpu.memory_space<vmem>>, vector<8x128xf32>
    tpu.vector_store %arg6[%c0_6, %c0_7], %12 {strides = array<i32>} : memref<8x128xf32, #tpu.memory_space<vmem>>, vector<8x128xf32>,
    return
  }
  func.func @transform_0(%arg0: i32, %arg1: i32) -> (i32, i32) {
    %c0_i32 = arith.constant 0 : i32
    %c0_i32_0 = arith.constant 0 : i32
    return %arg1, %c0_i32 : i32, i32
  }
  func.func @transform_1(%arg0: i32, %arg1: i32) -> (i32, i32) {
    %c0_i32 = arith.constant 0 : i32
    %c0_i32_0 = arith.constant 0 : i32
    return %c0_i32, %arg0 : i32, i32
  }
  func.func @transform_2(%arg0: i32, %arg1: i32) -> (i32, i32) {
    %c0_i32 = arith.constant 0 : i32
    %c0_i32_0 = arith.constant 0 : i32
    return %arg1, %c0_i32 : i32, i32
  }
  func.func @transform_3(%arg0: i32, %arg1: i32) -> (i32, i32) {
    %c0_i32 = arith.constant 0 : i32
    %c0_i32_0 = arith.constant 0 : i32
    return %arg1, %c0_i32 : i32, i32
  }
  func.func @transform_4(%arg0: i32, %arg1: i32) -> (i32, i32) {
    %c0_i32 = arith.constant 0 : i32
    return %arg1, %arg0 : i32, i32
  }
}

</mosaic_0001>

<llo_original>
// kernel: tpu_custom_call.1
$region0: #{tpu_custom_call.1}
  #allocation0 [shape = 'u32[]', space=smem, size = 0x4, offset = 0x4, fixed_abs, tag = 'smem constant byte address 0x4 - core index']
  #allocation1 [shape = 'u32[144,128]{1,0:T(1,128)}', space=vmem, size = 0x12000, scoped, tag = 'internal scratch']
  #allocation2 [shape = 'f32[1,128]{1,0:T(1,128)}', space=vmem, size = 0x200, scoped, tag = 'scratch operand']
  %s0 = inlined_call_operand.vmem [shape: f32[8,32], index: 0, kind: input, shape index: {}]
  %s1 = inlined_call_operand.hbm [shape: f32[32,128], index: 1, kind: input, shape index: {}]
  %s2 = inlined_call_operand.vmem [shape: s32[8,1], index: 2, kind: input, shape index: {}]
  %s3 = inlined_call_operand.vmem [shape: f32[8,1], index: 3, kind: input, shape index: {}]
  %s4 = inlined_call_operand.hbm [shape: f32[8,128], index: 4, kind: output, shape index: {}]
  %s5 = sld [smem:[#allocation0]]
  $region30: #{tpu_custom_call.1} parent=0
    _
  %s7 = ssub.s32 1, %s5
  %s8 = scalar_select 0, %s7, %s5
  $region1: #{tpu_custom_call.1} parent=0
    #allocation3 [shape = 'u8[16384]{0}', space=vmem, size = 0x4000, scoped, tag = 'input window, operand 1, single buffered']
    #allocation4 [shape = 's32[1]{0}', space=sflag, size = 0x4, scoped, tag = 'scoped memory for tpu_custom_call.1']
    #allocation5 [shape = 's32[1]{0}', space=sflag, size = 0x4, scoped, tag = 'scoped memory for tpu_custom_call.1']
    #allocation6 [shape = 'u8[4096]{0}', space=vmem, size = 0x1000, scoped, tag = 'output window, operand 0, single buffered']
    %9 = vsyncpa [#allocation4], 0
    %10 = vsyncpa [#allocation5], 0
    // Predicated region
    $region2: #{tpu_custom_call.1} parent=1 // pred_check
      _
    $region3: #{tpu_custom_call.1} parent=1 // pred_check_branch
      %12 = sbr.rel (0) target = $region5
    $region4: #{tpu_custom_call.1} parent=1 // pred_region
      _
    $region5: #{tpu_custom_call.1} parent=1 // pred_fallthru
      _
    // Predicated region
    $region6: #{tpu_custom_call.1} parent=1 // pred_check
      _
    $region7: #{tpu_custom_call.1} parent=1 // pred_check_branch
      %14 = sbr.rel (0) target = $region9
    $region8: #{tpu_custom_call.1} parent=1 // pred_region
      %s16 = ssub.s32 512, 512
      %17 = vsyncadd [#allocation4], %s16
      %s18 = sshll.u32 [#allocation3], 4
      %s19 = int_to_ptr.vmem [resolvable:$true] %s18
      %24 = dma.hbm_to_vmem [thread:$0]  %s1, 512, %s19, [#allocation4], 128, 128, 8
    $region9: #{tpu_custom_call.1} parent=1 // pred_fallthru
      _
    // Predicated region
    $region10: #{tpu_custom_call.1} parent=1 // pred_check
      _
    $region11: #{tpu_custom_call.1} parent=1 // pred_check_branch
      %26 = sbr.rel (0) target = $region13
    $region12: #{tpu_custom_call.1} parent=1 // pred_region
      _
    $region13: #{tpu_custom_call.1} parent=1 // pred_fallthru
      _
    // Predicated region
    $region14: #{tpu_custom_call.1} parent=1 // pred_check
      _
    $region15: #{tpu_custom_call.1} parent=1 // pred_check_branch
      %28 = sbr.rel (0) target = $region17
    $region16: #{tpu_custom_call.1} parent=1 // pred_region
      _
    $region17: #{tpu_custom_call.1} parent=1 // pred_fallthru
      _
    // Predicated region
    $region18: #{tpu_custom_call.1} parent=1 // pred_check
      _
    $region19: #{tpu_custom_call.1} parent=1 // pred_check_branch
      %30 = sbr.rel (0) target = $region21
    $region20: #{tpu_custom_call.1} parent=1 // pred_region
      %31 = dma.done [#allocation4], 512
    $region21: #{tpu_custom_call.1} parent=1 // pred_fallthru
      _
    %v32 = vld [vmem:[%s0] sm:$0xff]
    %v33 = vld [vmem:[#allocation3] sm:$0xff]
    %v34 = vld [vmem:[#allocation3 + $0x8] sm:$0xff]
    %v35 = vld [vmem:[#allocation3 + $0x10] sm:$0xff]
    %v36 = vld [vmem:[#allocation3 + $0x18] sm:$0xff]
    %vm37 = vcmask 261120
    %v39 = vsel %vm37, %v32, 0
    %41 = vmatprep.subr.mxu0 0.0
    %42 = vmatpush1.msra.mxu0 0.0
    %43 = vmatprep.subr.mxu0 0.0
    %44 = vmatpush1.msra.mxu0 0.0
    %45 = vmatprep.subr.mxu0 0.0
    %46 = vmatpush1.msra.mxu0 0.0
    %47 = vmatprep.subr.mxu0 0.0
    %48 = vmatpush1.msra.mxu0 0.0
    %49 = vmatprep.subr.mxu0 0.0
    %50 = vmatpush1.msra.mxu0 0.0
    %51 = vmatprep.subr.mxu0 0.0
    %52 = vmatpush1.msra.mxu0 0.0
    %53 = vmatprep.subr.mxu0 0.0
    %54 = vmatpush1.msra.mxu0 0.0
    %55 = vmatprep.subr.mxu0 0.0
    %56 = vmatpush1.msra.mxu0 0.0
    %57 = vmatprep.subr.mxu0 0.0
    %58 = vmatpush1.msra.mxu0 0.0
    %59 = vmatprep.subr.mxu0 0.0
    %60 = vmatpush1.msra.mxu0 0.0
    %61 = vmatprep.subr.mxu0 0.0
    %62 = vmatpush1.msra.mxu0 0.0
    %63 = vmatprep.subr.mxu0 0.0
    %64 = vmatpush1.msra.mxu0 0.0
    %65 = vmatprep.subr.mxu0 0.0
    %66 = vmatpush1.msra.mxu0 %v36
    %67 = vmatprep.subr.mxu0 0.0
    %68 = vmatpush1.msra.mxu0 %v35
    %69 = vmatprep.subr.mxu0 0.0
    %70 = vmatpush1.msra.mxu0 %v34
    %71 = vmatprep.subr.mxu0 0.0
    %72 = vmatpush1.msra.mxu0 %v33
    %73 = vmatprep.subr.mxu0 0.0
    %74 = vmatpush2.msra.mxu0 0.0
    %75 = vmatprep.subr.mxu0 0.0
    %76 = vmatpush2.msra.mxu0 0.0
    %77 = vmatprep.subr.mxu0 0.0
    %78 = vmatpush2.msra.mxu0 0.0
    %79 = vmatprep.subr.mxu0 0.0
    %80 = vmatpush2.msra.mxu0 0.0
    %81 = vmatprep.subr.mxu0 0.0
    %82 = vmatpush2.msra.mxu0 0.0
    %83 = vmatprep.subr.mxu0 0.0
    %84 = vmatpush2.msra.mxu0 0.0
    %85 = vmatprep.subr.mxu0 0.0
    %86 = vmatpush2.msra.mxu0 0.0
    %87 = vmatprep.subr.mxu0 0.0
    %88 = vmatpush2.msra.mxu0 0.0
    %89 = vmatprep.subr.mxu0 0.0
    %90 = vmatpush2.msra.mxu0 0.0
    %91 = vmatprep.subr.mxu0 0.0
    %92 = vmatpush2.msra.mxu0 0.0
    %93 = vmatprep.subr.mxu0 0.0
    %94 = vmatpush2.msra.mxu0 0.0
    %95 = vmatprep.subr.mxu0 0.0
    %96 = vmatpush2.msra.mxu0 0.0
    %97 = vmatprep.subr.mxu0 0.0
    %98 = vmatpush2.msra.mxu0 0.0
    %99 = vmatprep.subr.mxu0 0.0
    %100 = vmatpush2.msra.mxu0 0.0
    %101 = vmatprep.subr.mxu0 0.0
    %102 = vmatpush2.msra.mxu0 0.0
    %103 = vmatprep.subr.mxu0 0.0
    %104 = vmatpush2.msra.mxu0 0.0
    %105 = vmatprep.mubr.f32.mxu0 0.0
    %106 = vmatmul.mubr.f32.gmra.mxu0 %v39
    %v107 = vpop.f32.mrf.mxu0
    %v108 = vadd.f32 0.0, %v107
    %v109 = vpop.f32.mrf.mxu0
    %110 = vdwg.mxu0
    %v111 = vld [vmem:[%s2] sm:$0xff]
    %s112 = smul.u32 0, 128
    %v113 = vlaneseq
    %v114 = vand.u32 %v113, 127
    %v115 = vstv %s112
    %v116 = vadd.s32 %v115, %v114
    %117 = vset.pattern.permute.xlu0 0
    %118 = vperm.xlu0 %117, %v111
    %v119 = vpop.permute.xlu0 %118
    %vm120 = vcmp.eq.s32.totalorder %v116, %v119
    %v121 = vsub.f32 %v108, 0.3
    %v122 = vsel %vm120, %v121, %v108
    %123 = vst [vmem:[#allocation6] sm:$0xff] %v122
    // Predicated region
    $region22: #{tpu_custom_call.1} parent=1 // pred_check
      _
    $region23: #{tpu_custom_call.1} parent=1 // pred_check_branch
      %125 = sbr.rel (0) target = $region25
    $region24: #{tpu_custom_call.1} parent=1 // pred_region
      %s127 = ssub.s32 128, 128
      %128 = vsyncadd [#allocation5], %s127
      %s130 = sshll.u32 [#allocation6], 4
      %s131 = int_to_ptr.vmem [resolvable:$true] %s130
      %133 = dma.vmem_to_hbm [thread:$0]  %s131, 128, %s4, [#allocation5]
    $region25: #{tpu_custom_call.1} parent=1 // pred_fallthru
      _
    // Predicated region
    $region26: #{tpu_custom_call.1} parent=1 // pred_check
      _
    $region27: #{tpu_custom_call.1} parent=1 // pred_check_branch
      %135 = sbr.rel (0) target = $region29
    $region28: #{tpu_custom_call.1} parent=1 // pred_region
      %136 = dma.done [#allocation5], 128
    $region29: #{tpu_custom_call.1} parent=1 // pred_fallthru
      _
    %137 = vsyncpa [#allocation4], 1
    %138 = vsyncpa [#allocation5], 1

</llo_original>
